<compile_context>
chip_gen: v6e
topology: v6e:2x2x1
jax: 0.10.0
libtpu: 0.0.40
codegen_flags: <defaults>
</compile_context>

<pallas_src>
import jax
import jax.numpy as jnp
from jax.experimental import pallas as pl
from jax.experimental.pallas import tpu as pltpu


_VMEM_LIMIT_BYTES = 32 * 1024 * 1024      # <= physical VMEM on v5e/v6e/v7x
_STREAM_BYTES_TARGET = 20 * 1024 * 1024   # budget for double-buffered streaming blocks
_SPLIT_THRESHOLD_ROWS = 4096              # above this, prefer >= 2 blocks (v7x megacore)


def _round_up(x, m):
    return ((x + m - 1) // m) * m


def _pick_block_rows(total_rows, stream_bytes_per_row):
    """Rows per block: as large as the VMEM budget allows (8-aligned), with a
    preference for an even block count >= 2 on big problems so v7x's two
    TensorCores both get work from the "parallel" grid axis."""
    budget_rows = max(8, (_STREAM_BYTES_TARGET // stream_bytes_per_row) // 8 * 8)
    if total_rows <= budget_rows:
        if total_rows >= _SPLIT_THRESHOLD_ROWS:
            return min(budget_rows, _round_up(pl.cdiv(total_rows, 2), 8))
        return total_rows
    blocks = pl.cdiv(total_rows, budget_rows)
    if blocks % 2:
        blocks += 1                        # prefer an even block count
    return min(budget_rows, _round_up(pl.cdiv(total_rows, blocks), 8))


def _validate_block_rows(block_rows, total_rows):
    block_rows = int(block_rows)
    if block_rows >= total_rows:
        return total_rows
    if block_rows < 8 or block_rows % 8 != 0:
        raise ValueError(
            "block_rows must be a multiple of 8 (or >= the total number of "
            f"rows); got {block_rows} for {total_rows} rows")
    return block_rows


def _sigmoid_stable(z):
    # Numerically stable sigmoid: the exp() argument is always <= 0, and a
    # single reciprocal replaces two divides.  (pl.reciprocal(..., approx=True)
    # would push it onto the EUP approx path at ~1e-3 relative accuracy.)
    pos = z >= 0.0
    e = jnp.exp(jnp.where(pos, -z, z))
    inv = pl.reciprocal(1.0 + e)
    return jnp.where(pos, inv, e * inv)


def _packed_kernel(xp_ref, wmat_ref, b_ref, o_ref):
    # xp_ref:   (TR, 128) packed batch tile (S = 128/P samples per row)
    # wmat_ref: (128, S)  resident block-diagonal weights kron(I_S, w)
    # b_ref:    (1, 1)    bias scalar in SMEM
    # o_ref:    (TR, S)   sigmoid outputs; sample n = row * S + col
    z = jnp.dot(xp_ref[...], wmat_ref[...],
                preferred_element_type=jnp.float32) + b_ref[0, 0]
    o_ref[...] = _sigmoid_stable(z)


def _general_kernel(x_ref, w_ref, b_ref, o_ref):
    # x_ref: (TM, P) batch tile; w_ref: (1, P) resident weight; b_ref: SMEM bias
    z = jnp.sum(x_ref[...] * w_ref[...], axis=-1, keepdims=True) + b_ref[0, 0]
    o_ref[...] = _sigmoid_stable(z)


def _common_params(n, p):
    return dict(
        compiler_params=pltpu.CompilerParams(
            dimension_semantics=("parallel",),
            vmem_limit_bytes=_VMEM_LIMIT_BYTES,
        ),
        cost_estimate=pl.CostEstimate(
            flops=2 * n * p + 4 * n,
            transcendentals=n,
            bytes_accessed=4 * (n * p + n + p + 1),
        ),
    )


def _forward_packed(x, weight, bias2d, n, p, s, block_rows):
    rows = n // s
    xp = x.reshape(rows, 128)                              # free row-major reshape
    # (128, s): column s holds w in rows [s*P, (s+1)*P) -> one MXU matmul does
    # the segmented per-sample reduction for all S samples of a packed row.
    wmat = jnp.kron(jnp.eye(s, dtype=jnp.float32), weight.reshape(p, 1))

    # Per packed row: x block (128 lanes) + lane-padded output block, both
    # double-buffered.
    stream_bytes_per_row = 2 * 128 * 4 + 2 * 128 * 4
    tr = (_pick_block_rows(rows, stream_bytes_per_row) if block_rows is None
          else _validate_block_rows(block_rows, rows))

    out = pl.pallas_call(
        _packed_kernel,
        out_shape=jax.ShapeDtypeStruct((rows, s), jnp.float32),
        grid=(pl.cdiv(rows, tr),),
        in_specs=[
            pl.BlockSpec((tr, 128), lambda i: (i, 0)),          # streamed packed tiles
            pl.BlockSpec((128, s), lambda i: (0, 0)),           # resident weights
            pl.BlockSpec(memory_space=pltpu.MemorySpace.SMEM),  # bias scalar
        ],
        out_specs=pl.BlockSpec((tr, s), lambda i: (i, 0)),
        **_common_params(n, p),
    )(xp, wmat, bias2d)
    return out.reshape(n, 1)


def _forward_general(x, weight, bias2d, n, p, block_rows):
    p_padded = _round_up(p, 128)
    # Per row: lane-padded x block + lane-padded (TM, 1) output block, both
    # double-buffered (the padded output costs as much as a P=128 x row).
    stream_bytes_per_row = 2 * p_padded * 4 + 2 * 128 * 4
    tm = (_pick_block_rows(n, stream_bytes_per_row) if block_rows is None
          else _validate_block_rows(block_rows, n))

    return pl.pallas_call(
        _general_kernel,
        out_shape=jax.ShapeDtypeStruct((n, 1), jnp.float32),
        grid=(pl.cdiv(n, tm),),
        in_specs=[
            pl.BlockSpec((tm, p), lambda i: (i, 0)),            # streamed batch tiles
            pl.BlockSpec((1, p), lambda i: (0, 0)),             # resident weight
            pl.BlockSpec(memory_space=pltpu.MemorySpace.SMEM),  # bias scalar
        ],
        out_specs=pl.BlockSpec((tm, 1), lambda i: (i, 0)),
        **_common_params(n, p),
    )(x, weight, bias2d)


def logistic_forward(x, weight, bias, *, block_rows=None):
    """sigmoid(x @ weight.T + bias) computed with a batch-tiled Pallas kernel.

    x:      [N, P] float32
    weight: [1, P] float32   (torch.nn.Linear(p, 1).weight layout)
    bias:   [1]    float32   (torch.nn.Linear(p, 1).bias layout)
    returns [N, 1] float32

    `block_rows` (optional) is the number of kernel-visible rows per tile
    (packed rows when the lane-packed path is taken); must be a multiple of 8
    or >= the total row count.
    """
    x = jnp.asarray(x, jnp.float32)
    n, p = x.shape
    weight = jnp.asarray(weight, jnp.float32).reshape(1, p)
    bias2d = jnp.asarray(bias, jnp.float32).reshape(1, 1)

    if p <= 128 and 128 % p == 0 and n % (128 // p) == 0:
        return _forward_packed(x, weight, bias2d, n, p, 128 // p, block_rows)
    return _forward_general(x, weight, bias2d, n, p, block_rows)


if __name__ == "__main__":
    key = jax.random.PRNGKey(0)
    kx, kw, kb = jax.random.split(key, 3)

    # LogisticModel(p): torch.nn.Linear(p, 1) -> weight (1, p), bias (1,).
    N, P = 8, 32
    x = jax.random.normal(kx, (N, P), dtype=jnp.float32)
    weight = jax.random.normal(kw, (1, P), dtype=jnp.float32) * 0.1
    bias = jax.random.normal(kb, (1,), dtype=jnp.float32) * 0.1

    def ref_fn(xi, wi, bi):
        return jax.nn.sigmoid(
            jnp.dot(xi, wi.T, precision=jax.lax.Precision.HIGHEST) + bi)

    # 1) Tiny problem -> lane-packed MXU path, single full block.
    out = logistic_forward(x, weight, bias)
    jax.block_until_ready(out)
    assert out.shape == (N, 1)
    # Slightly relaxed tolerance: the in-kernel MXU f32 matmul may use bf16
    # passes; worst case is well under 5e-4 on sigmoid outputs at this scale.
    assert jnp.allclose(out, ref_fn(x, weight, bias), atol=5e-4, rtol=5e-4)

    # 2) Packed path with multiple pipelined blocks and a partial last block
    #    (520 samples -> 130 packed rows, 64-row tiles -> blocks of 64/64/2).
    N2 = 520
    x2 = jax.random.normal(kx, (N2, P), dtype=jnp.float32)
    out2 = logistic_forward(x2, weight, bias, block_rows=64)
    jax.block_until_ready(out2)
    assert out2.shape == (N2, 1)
    assert jnp.allclose(out2, ref_fn(x2, weight, bias), atol=5e-4, rtol=5e-4)

    # 3) General path (P does not divide 128), tiled batch with partial block.
    N3, P3 = 272, 72
    x3 = jax.random.normal(kx, (N3, P3), dtype=jnp.float32)
    w3 = jax.random.normal(kw, (1, P3), dtype=jnp.float32) * 0.1
    b3 = jax.random.normal(kb, (1,), dtype=jnp.float32) * 0.1
    out3 = logistic_forward(x3, w3, b3, block_rows=128)
    jax.block_until_ready(out3)
    assert out3.shape == (N3, 1)
    assert jnp.allclose(out3, ref_fn(x3, w3, b3), atol=1e-5, rtol=1e-5)

    print("KERNEL_OK")
</pallas_src>

<mosaic_0001>
module attributes {stable_mosaic.version = 11 : i64} {
  func.func @_packed_kernel(%arg0: i32, %arg1: memref<2x128xf32, #tpu.memory_space<vmem>>, %arg2: memref<128x4xf32, #tpu.memory_space<vmem>>, %arg3: memref<1x1xf32, #tpu.memory_space<smem>>, %arg4: memref<2x4xf32, #tpu.memory_space<vmem>>) attributes {dimension_semantics = [#tpu.dimension_semantics<parallel>], iteration_bounds = array<i64: 1>, scalar_prefetch = 0 : i64, scratch_operands = 0 : i64, tpu.core_type = #tpu.core_type<tc>, window_params = [{transform_indices = @transform_0, window_bounds = array<i64: 2, 128>}, {pipeline_mode = #tpu.pipeline_mode<synchronous>, transform_indices = @transform_1, window_bounds = array<i64: 128, 4>}, {transform_indices = @transform_2, window_bounds = array<i64: 1, 1>}, {transform_indices = @transform_3, window_bounds = array<i64: 2, 4>}]} {
    %c0 = arith.constant 0 : index
    %c0_0 = arith.constant 0 : index
    %0 = vector.load %arg1[%c0, %c0_0] : memref<2x128xf32, #tpu.memory_space<vmem>>, vector<2x128xf32>
    %c0_1 = arith.constant 0 : index
    %c0_2 = arith.constant 0 : index
    %1 = vector.load %arg2[%c0_1, %c0_2] : memref<128x4xf32, #tpu.memory_space<vmem>>, vector<128x4xf32>
    %cst = arith.constant dense<0.000000e+00> : vector<2x4xf32>
    %2 = tpu.matmul %0, %1, %cst {dimension_numbers = #tpu.dot_dimension_numbers<[1], [0], [0], [1], [0, 0, 1, 1], [], []>} : vector<2x128xf32>, vector<128x4xf32>, vector<2x4xf32> -> vector<2x4xf32>
    %c0_3 = arith.constant 0 : index
    %c0_4 = arith.constant 0 : index
    %3 = memref.load %arg3[%c0_3, %c0_4] : memref<1x1xf32, #tpu.memory_space<smem>>
    %4 = vector.broadcast %3 : f32 to vector<2x4xf32>
    %5 = arith.addf %2, %4 : vector<2x4xf32>
    %cst_5 = arith.constant 0.000000e+00 : f32
    %6 = vector.broadcast %cst_5 : f32 to vector<2x4xf32>
    %7 = arith.cmpf oge, %5, %6 : vector<2x4xf32>
    %cst_6 = arith.constant 0.000000e+00 : f32
    %8 = vector.broadcast %cst_6 : f32 to vector<2x4xf32>
    %9 = arith.subf %8, %5 : vector<2x4xf32>
    %10 = arith.select %7, %9, %5 : vector<2x4xi1>, vector<2x4xf32>
    %11 = math.exp %10 : vector<2x4xf32>
    %cst_7 = arith.constant 1.000000e+00 : f32
    %12 = vector.broadcast %cst_7 : f32 to vector<2x4xf32>
    %13 = arith.addf %12, %11 : vector<2x4xf32>
    %14 = tpu.reciprocal %13 : vector<2x4xf32> -> vector<2x4xf32>
    %15 = arith.mulf %11, %14 : vector<2x4xf32>
    %16 = arith.select %7, %14, %15 : vector<2x4xi1>, vector<2x4xf32>
    %c0_8 = arith.constant 0 : index
    %c0_9 = arith.constant 0 : index
    %17 = vector.load %arg4[%c0_8, %c0_9] : memref<2x4xf32, #tpu.memory_space<vmem>>, vector<2x4xf32>
    tpu.vector_store %arg4[%c0_8, %c0_9], %16 {strides = array<i32>} : memref<2x4xf32, #tpu.memory_space<vmem>>, vector<2x4xf32>,
    return
  }
  func.func @transform_0(%arg0: i32) -> (i32, i32) {
    %c0_i32 = arith.constant 0 : i32
    %c0_i32_0 = arith.constant 0 : i32
    return %arg0, %c0_i32 : i32, i32
  }
  func.func @transform_1(%arg0: i32) -> (i32, i32) {
    %c0_i32 = arith.constant 0 : i32
    %c0_i32_0 = arith.constant 0 : i32
    %c0_i32_1 = arith.constant 0 : i32
    return %c0_i32, %c0_i32_0 : i32, i32
  }
  func.func @transform_2(%arg0: i32) -> (i32, i32) {
    %c0_i32 = arith.constant 0 : i32
    %c0_i32_0 = arith.constant 0 : i32
    %c0_i32_1 = arith.constant 0 : i32
    return %c0_i32, %c0_i32_0 : i32, i32
  }
  func.func @transform_3(%arg0: i32) -> (i32, i32) {
    %c0_i32 = arith.constant 0 : i32
    %c0_i32_0 = arith.constant 0 : i32
    return %arg0, %c0_i32 : i32, i32
  }
}

</mosaic_0001>

<llo_original>
// kernel: tpu_custom_call.1
$region0: #{tpu_custom_call.1}
  #allocation0 [shape = 'u32[]', space=smem, size = 0x4, offset = 0x4, fixed_abs, tag = 'smem constant byte address 0x4 - core index']
  #allocation1 [shape = 'u32[144,128]{1,0:T(1,128)}', space=vmem, size = 0x12000, scoped, tag = 'internal scratch']
  #allocation2 [shape = 'f32[1,1]{1,0:T(1,128)S(6)}', space=smem, size = 0x200, scoped, tag = 'scoped memory for tpu_custom_call.1']
  %s0 = inlined_call_operand.vmem [shape: f32[2,128], index: 0, kind: input, shape index: {}]
  %s1 = inlined_call_operand.vmem [shape: f32[128,4], index: 1, kind: input, shape index: {}]
  %s2 = inlined_call_operand.<no memory space> [shape: f32[1,1], index: 2, kind: input, shape index: {}]
  %s3 = inlined_call_operand.hbm [shape: f32[2,4], index: 3, kind: output, shape index: {}]
  %s4 = sld [smem:[#allocation0]]
  $region22: #{tpu_custom_call.1} parent=0
    _
  %s6 = ssub.s32 1, %s4
  %s7 = scalar_select 0, %s6, %s4
  %8 = sst [smem:[#allocation2]] %s2
  $region1: #{tpu_custom_call.1} parent=0
    #allocation3 [shape = 'u8[1024]{0}', space=vmem, size = 0x400, scoped, tag = 'output window, operand 0, single buffered']
    #allocation4 [shape = 's32[1]{0}', space=sflag, size = 0x4, scoped, tag = 'scoped memory for tpu_custom_call.1']
    %9 = vsyncpa [#allocation4], 0
    // Predicated region
    $region2: #{tpu_custom_call.1} parent=1 // pred_check
      _
    $region3: #{tpu_custom_call.1} parent=1 // pred_check_branch
      %11 = sbr.rel (0) target = $region5
    $region4: #{tpu_custom_call.1} parent=1 // pred_region
      _
    $region5: #{tpu_custom_call.1} parent=1 // pred_fallthru
      _
    // Predicated region
    $region6: #{tpu_custom_call.1} parent=1 // pred_check
      _
    $region7: #{tpu_custom_call.1} parent=1 // pred_check_branch
      %13 = sbr.rel (0) target = $region9
    $region8: #{tpu_custom_call.1} parent=1 // pred_region
      _
    $region9: #{tpu_custom_call.1} parent=1 // pred_fallthru
      _
    // Predicated region
    $region10: #{tpu_custom_call.1} parent=1 // pred_check
      _
    $region11: #{tpu_custom_call.1} parent=1 // pred_check_branch
      %15 = sbr.rel (0) target = $region13
    $region12: #{tpu_custom_call.1} parent=1 // pred_region
      _
    $region13: #{tpu_custom_call.1} parent=1 // pred_fallthru
      _
    %v16 = vld [vmem:[%s0] sm:$0x3]
    %v17 = vld [vmem:[%s1] sm:$0xff]
    %v18 = vld [vmem:[%s1 + $0x8] sm:$0xff]
    %v19 = vld [vmem:[%s1 + $0x10] sm:$0xff]
    %v20 = vld [vmem:[%s1 + $0x18] sm:$0xff]
    %v21 = vld [vmem:[%s1 + $0x20] sm:$0xff]
    %v22 = vld [vmem:[%s1 + $0x28] sm:$0xff]
    %v23 = vld [vmem:[%s1 + $0x30] sm:$0xff]
    %v24 = vld [vmem:[%s1 + $0x38] sm:$0xff]
    %v25 = vld [vmem:[%s1 + $0x40] sm:$0xff]
    %v26 = vld [vmem:[%s1 + $0x48] sm:$0xff]
    %v27 = vld [vmem:[%s1 + $0x50] sm:$0xff]
    %v28 = vld [vmem:[%s1 + $0x58] sm:$0xff]
    %v29 = vld [vmem:[%s1 + $0x60] sm:$0xff]
    %v30 = vld [vmem:[%s1 + $0x68] sm:$0xff]
    %v31 = vld [vmem:[%s1 + $0x70] sm:$0xff]
    %v32 = vld [vmem:[%s1 + $0x78] sm:$0xff]
    %s33 = sld [smem:[#allocation2]]
    %v34 = vstv %s33
    %35 = vmatprep.subr.mxu0 0.0
    %36 = vmatpush1.msra.mxu0 %v32
    %37 = vmatprep.subr.mxu0 0.0
    %38 = vmatpush1.msra.mxu0 %v31
    %39 = vmatprep.subr.mxu0 0.0
    %40 = vmatpush1.msra.mxu0 %v30
    %41 = vmatprep.subr.mxu0 0.0
    %42 = vmatpush1.msra.mxu0 %v29
    %43 = vmatprep.subr.mxu0 0.0
    %44 = vmatpush1.msra.mxu0 %v28
    %45 = vmatprep.subr.mxu0 0.0
    %46 = vmatpush1.msra.mxu0 %v27
    %47 = vmatprep.subr.mxu0 0.0
    %48 = vmatpush1.msra.mxu0 %v26
    %49 = vmatprep.subr.mxu0 0.0
    %50 = vmatpush1.msra.mxu0 %v25
    %51 = vmatprep.subr.mxu0 0.0
    %52 = vmatpush1.msra.mxu0 %v24
    %53 = vmatprep.subr.mxu0 0.0
    %54 = vmatpush1.msra.mxu0 %v23
    %55 = vmatprep.subr.mxu0 0.0
    %56 = vmatpush1.msra.mxu0 %v22
    %57 = vmatprep.subr.mxu0 0.0
    %58 = vmatpush1.msra.mxu0 %v21
    %59 = vmatprep.subr.mxu0 0.0
    %60 = vmatpush1.msra.mxu0 %v20
    %61 = vmatprep.subr.mxu0 0.0
    %62 = vmatpush1.msra.mxu0 %v19
    %63 = vmatprep.subr.mxu0 0.0
    %64 = vmatpush1.msra.mxu0 %v18
    %65 = vmatprep.subr.mxu0 0.0
    %66 = vmatpush1.msra.mxu0 %v17
    %67 = vmatprep.subr.mxu0 0.0
    %68 = vmatpush2.msra.mxu0 0.0
    %69 = vmatprep.subr.mxu0 0.0
    %70 = vmatpush2.msra.mxu0 0.0
    %71 = vmatprep.subr.mxu0 0.0
    %72 = vmatpush2.msra.mxu0 0.0
    %73 = vmatprep.subr.mxu0 0.0
    %74 = vmatpush2.msra.mxu0 0.0
    %75 = vmatprep.subr.mxu0 0.0
    %76 = vmatpush2.msra.mxu0 0.0
    %77 = vmatprep.subr.mxu0 0.0
    %78 = vmatpush2.msra.mxu0 0.0
    %79 = vmatprep.subr.mxu0 0.0
    %80 = vmatpush2.msra.mxu0 0.0
    %81 = vmatprep.subr.mxu0 0.0
    %82 = vmatpush2.msra.mxu0 0.0
    %83 = vmatprep.subr.mxu0 0.0
    %84 = vmatpush2.msra.mxu0 0.0
    %85 = vmatprep.subr.mxu0 0.0
    %86 = vmatpush2.msra.mxu0 0.0
    %87 = vmatprep.subr.mxu0 0.0
    %88 = vmatpush2.msra.mxu0 0.0
    %89 = vmatprep.subr.mxu0 0.0
    %90 = vmatpush2.msra.mxu0 0.0
    %91 = vmatprep.subr.mxu0 0.0
    %92 = vmatpush2.msra.mxu0 0.0
    %93 = vmatprep.subr.mxu0 0.0
    %94 = vmatpush2.msra.mxu0 0.0
    %95 = vmatprep.subr.mxu0 0.0
    %96 = vmatpush2.msra.mxu0 0.0
    %97 = vmatprep.subr.mxu0 0.0
    %98 = vmatpush2.msra.mxu0 0.0
    %99 = vmatprep.mubr.f32.mxu0 0.0
    %100 = vmatmul.mubr.f32.gmra.mxu0 %v16
    %v101 = vpop.f32.mrf.mxu0
    %v102 = vadd.f32 %v34, %v101
    %v103 = vpop.f32.mrf.mxu0
    %104 = vdwg.mxu0
    %vm105 = vcmp.ge.f32.partialorder %v102, 0.0
    %v106 = vsub.f32 0.0, %v102
    %v107 = vsel %vm105, %v106, %v102
    %v108 = vmul.f32 %v107, 1.442695
    %v109 = vpow.pop %v108
    %v110 = vadd.f32 %v109, 1.0
    %v111 = vrcp.pop %v110
    %v112 = vmul.f32 %v109, %v111
    %v113 = vsel %vm105, %v111, %v112
    %vm114 = vcmask 25600
    %115 = vst.msk [vmem:[#allocation3] sm:$0x3] %vm114, %v113
    // Predicated region
    $region14: #{tpu_custom_call.1} parent=1 // pred_check
      _
    $region15: #{tpu_custom_call.1} parent=1 // pred_check_branch
      %117 = sbr.rel (0) target = $region17
    $region16: #{tpu_custom_call.1} parent=1 // pred_region
      %s119 = ssub.s32 32, 32
      %120 = vsyncadd [#allocation4], %s119
      %s122 = sshll.u32 [#allocation3], 4
      %s123 = int_to_ptr.vmem [resolvable:$true] %s122
      %125 = dma.vmem_to_hbm [thread:$0]  %s123, 32, %s3, [#allocation4]
    $region17: #{tpu_custom_call.1} parent=1 // pred_fallthru
      _
    // Predicated region
    $region18: #{tpu_custom_call.1} parent=1 // pred_check
      _
    $region19: #{tpu_custom_call.1} parent=1 // pred_check_branch
      %127 = sbr.rel (0) target = $region21
    $region20: #{tpu_custom_call.1} parent=1 // pred_region
      %128 = dma.done [#allocation4], 32
    $region21: #{tpu_custom_call.1} parent=1 // pred_fallthru
      _
    %129 = vsyncpa [#allocation4], 1

</llo_original>
